<compile_context>
chip_gen: v7x
topology: tpu7x:2x2x1
jax: 0.10.0
libtpu: 0.0.40
codegen_flags: <defaults>
</compile_context>

<pallas_src>
import math

import jax
import jax.numpy as jnp
from jax.experimental import pallas as pl
from jax.experimental.pallas import tpu as pltpu


def _ple_kernel(x_ref, expand_ref, bias_ref, lo_ref, hi_ref, out_ref):
    # x_ref:       (bt, F_t)      batch tile of input features (one feature chunk)
    # expand_ref:  (1, F_t, W_t)  block-diagonal one-hot * (1/width) for this chunk
    # bias_ref:    (1, 1, W_t)    -edges/width for this chunk
    # lo_ref/hi_ref: (1, W_t)     per-bin clamp bounds (+-inf where no clamp applies)
    x_scaled = jnp.dot(
        x_ref[...], expand_ref[0],
        preferred_element_type=jnp.float32,
        precision=jax.lax.Precision.HIGHEST,
    )                                                    # (bt, W_t) == x * inv_width
    ratio = x_scaled + bias_ref[0]
    out_ref[...] = jnp.minimum(jnp.maximum(ratio, lo_ref[...]),
                               hi_ref[...]).astype(out_ref.dtype)


def _choose_feature_tile(F):
    """Feature chunk size: full F when small, else a multiple of 128 dividing F."""
    if F <= 512:
        return F
    for cand in (128, 256, 512):
        if F % cand == 0:
            return cand
    # TODO(synk): ragged feature chunking for large F not divisible by 128;
    # this fallback keeps a single (F, F*NB) expand, which can be VMEM-heavy.
    return F


def _choose_batch_tile(batch, lane_width, block_bytes_target):
    """Batch tile (multiple of 8) targeting ~block_bytes_target f32 output blocks,
    capped so the batch ("parallel") axis has >= 2 grid steps when possible."""
    bytes_per_row = max(1, lane_width * 4)
    rows = block_bytes_target // bytes_per_row
    rows = max(8, min(4096, (rows // 8) * 8))
    if batch > 8:
        half = max(8, ((((batch + 1) // 2) + 7) // 8) * 8)
        rows = min(rows, half)
    return rows


def piecewise_linear_encoding(x, edges, width, *, batch_tile=None):
    """x: (..., F) f32; edges / width: (F, NB) f32 -> (..., F * NB) f32."""
    x = jnp.asarray(x, jnp.float32)
    edges = jnp.asarray(edges, jnp.float32)
    width = jnp.asarray(width, jnp.float32)

    F = x.shape[-1]
    F2, NB = edges.shape
    assert F == F2 and width.shape == (F, NB)
    W_out = F * NB
    lead = x.shape[:-1]
    x = x.reshape(-1, F)
    B = x.shape[0]

    # ---- lane-dense row packing when W is not a multiple of 128 ----------------
    W = W_out
    G = 1
    if W % 128 != 0 and B > 0:
        g = 128 // math.gcd(W, 128)            # smallest G with (G * W) % 128 == 0
        if (B % g == 0 and B // g >= 8
                and (g * F) * (g * W) * 4 <= (2 << 20)):
            G = g
    if G > 1:
        x = x.reshape(B // G, G * F)           # free, contiguous reshape
        edges = jnp.tile(edges, (G, 1))
        width = jnp.tile(width, (G, 1))
        B, F, W = B // G, G * F, G * W

    # ---- feature chunking -------------------------------------------------------
    F_t = _choose_feature_tile(F)
    n_chunks = F // F_t
    W_t = F_t * NB

    # ---- per-lane constants (scale folded into the MXU expand matrix) ----------
    inv_w = 1.0 / width                                              # (F, NB); width > 0
    eye = jnp.eye(F_t, dtype=jnp.float32)
    inv_w_c = inv_w.reshape(n_chunks, F_t, NB)
    # expand3[j, r, c*NB + b] = (r == c) * inv_w[j*F_t + c, b]
    expand3 = (eye[None, :, :, None] * inv_w_c[:, None, :, :]).reshape(
        n_chunks, F_t, W_t)
    bias3 = (-(edges * inv_w)).reshape(n_chunks, 1, W_t)             # -edges / width

    if NB > 1:
        b_idx = jnp.arange(NB)
        lo_row = jnp.where(b_idx == 0, -jnp.inf, 0.0)
        hi_row = jnp.where(b_idx == NB - 1, jnp.inf, 1.0)
    else:
        # single bin: the reference module applies no clamping at all
        lo_row = jnp.full((NB,), -jnp.inf)
        hi_row = jnp.full((NB,), jnp.inf)
    lo = jnp.tile(lo_row, (F_t,)).reshape(1, W_t).astype(jnp.float32)
    hi = jnp.tile(hi_row, (F_t,)).reshape(1, W_t).astype(jnp.float32)

    # ---- tiling / VMEM budget ----------------------------------------------------
    try:
        vmem_cap = pltpu.get_tpu_info().vmem_capacity_bytes
        vmem_limit = int(min(48 * 1024 * 1024, (vmem_cap * 3) // 4))
    except Exception:
        vmem_limit = None
    block_target = min(8 * 1024 * 1024,
                       (vmem_limit if vmem_limit else 32 * 1024 * 1024) // 6)
    if batch_tile is None:
        batch_tile = _choose_batch_tile(B, W_t, block_target)
    batch_tile = max(8, (int(batch_tile) // 8) * 8)

    grid = (pl.cdiv(B, batch_tile), n_chunks)

    cp_kwargs = dict(dimension_semantics=("parallel", "parallel"))
    if vmem_limit is not None:
        cp_kwargs["vmem_limit_bytes"] = vmem_limit

    out = pl.pallas_call(
        _ple_kernel,
        out_shape=jax.ShapeDtypeStruct((B, W), jnp.float32),
        grid_spec=pltpu.PrefetchScalarGridSpec(
            num_scalar_prefetch=0,
            grid=grid,
            in_specs=[
                pl.BlockSpec((batch_tile, F_t), lambda i, j: (i, j)),
                pl.BlockSpec((1, F_t, W_t), lambda i, j: (j, 0, 0)),
                pl.BlockSpec((1, 1, W_t), lambda i, j: (j, 0, 0)),
                pl.BlockSpec((1, W_t), lambda i, j: (0, 0)),
                pl.BlockSpec((1, W_t), lambda i, j: (0, 0)),
            ],
            out_specs=pl.BlockSpec((batch_tile, W_t), lambda i, j: (i, j)),
        ),
        compiler_params=pltpu.CompilerParams(**cp_kwargs),
    )(x, expand3, bias3, lo, hi)

    # Undo the row packing (free reshape) and restore leading dims.
    return out.reshape(*lead, W_out)


def _reference(x, edges, width):
    """Pure-JAX port of the torch same-bin-count forward path."""
    ratio = (x[..., None] - edges) / width
    nb = ratio.shape[-1]
    if nb > 1:
        first = jnp.minimum(ratio[..., :1], 1.0)
        last = jnp.maximum(ratio[..., -1:], 0.0)
        if nb == 2:
            ratio = jnp.concatenate([first, last], axis=-1)
        else:
            mid = jnp.clip(ratio[..., 1:-1], 0.0, 1.0)
            ratio = jnp.concatenate([first, mid, last], axis=-1)
    return ratio.reshape(*x.shape[:-1], x.shape[-1] * nb)


def _make_bins(key, F, n_edges):
    """Deterministic strictly-increasing edges -> (edges, width) of shape (F, n_edges-1)."""
    raw = jax.random.uniform(key, (F, n_edges), dtype=jnp.float32,
                             minval=0.1, maxval=1.0)
    edges_full = jnp.cumsum(raw, axis=-1) - 2.0
    return edges_full[:, :-1], jnp.diff(edges_full, axis=-1)


if __name__ == "__main__":
    key = jax.random.PRNGKey(0)
    k = jax.random.split(key, 6)

    # Tolerances: the affine fold (x/w - e/w instead of (x - e)/w) and the
    # HIGHEST-precision MXU pass differ from the reference by a few f32 ulps.
    ATOL, RTOL = 1e-4, 1e-5

    # Case 1: W = F*NB = 32 (< 128) with B divisible by the packing factor 4
    # -> exercises the lane-dense row-packing path (output emitted as (16, 128)).
    B1, F1, NE1 = 64, 4, 9
    x1 = jax.random.normal(k[0], (B1, F1), dtype=jnp.float32)
    e1, w1 = _make_bins(k[1], F1, NE1)
    out1 = jax.block_until_ready(piecewise_linear_encoding(x1, e1, w1))
    ref1 = _reference(x1, e1, w1)
    assert out1.shape == (B1, F1 * (NE1 - 1))
    assert jnp.allclose(out1, ref1, atol=ATOL, rtol=RTOL)

    # Case 2: ragged batch (13 rows) + a single bin per feature (NB=1, no clamp)
    # -> exercises the masked boundary block (no pad/slice copies anywhere).
    B2, F2, NE2 = 13, 4, 2
    x2 = jax.random.normal(k[2], (B2, F2), dtype=jnp.float32)
    e2, w2 = _make_bins(k[3], F2, NE2)
    out2 = jax.block_until_ready(piecewise_linear_encoding(x2, e2, w2))
    ref2 = _reference(x2, e2, w2)
    assert out2.shape == (B2, F2 * (NE2 - 1))
    assert jnp.allclose(out2, ref2, atol=ATOL, rtol=RTOL)

    # Case 3: many features (640) -> exercises the feature-chunk grid axis
    # (block-diagonal expand, F_t = 128, 5 chunks) together with a ragged batch.
    B3, F3, NE3 = 24, 640, 3
    x3 = jax.random.normal(k[4], (B3, F3), dtype=jnp.float32)
    e3, w3 = _make_bins(k[5], F3, NE3)
    out3 = jax.block_until_ready(piecewise_linear_encoding(x3, e3, w3))
    ref3 = _reference(x3, e3, w3)
    assert out3.shape == (B3, F3 * (NE3 - 1))
    assert jnp.allclose(out3, ref3, atol=ATOL, rtol=RTOL)

    print("KERNEL_OK")
</pallas_src>

<mosaic_0001>
module attributes {stable_mosaic.version = 11 : i64} {
  func.func @_ple_kernel(%arg0: i32, %arg1: i32, %arg2: memref<8x16xf32, #tpu.memory_space<vmem>>, %arg3: memref<1x16x128xf32, #tpu.memory_space<vmem>>, %arg4: memref<1x1x128xf32, #tpu.memory_space<vmem>>, %arg5: memref<1x128xf32, #tpu.memory_space<vmem>>, %arg6: memref<1x128xf32, #tpu.memory_space<vmem>>, %arg7: memref<8x128xf32, #tpu.memory_space<vmem>>) attributes {dimension_semantics = [#tpu.dimension_semantics<parallel>, #tpu.dimension_semantics<parallel>], iteration_bounds = array<i64: 2, 1>, scalar_prefetch = 0 : i64, scratch_operands = 0 : i64, tpu.core_type = #tpu.core_type<tc>, window_params = [{transform_indices = @transform_0, window_bounds = array<i64: 8, 16>}, {transform_indices = @transform_1, window_bounds = array<i64: 1, 16, 128>}, {transform_indices = @transform_2, window_bounds = array<i64: 1, 1, 128>}, {pipeline_mode = #tpu.pipeline_mode<synchronous>, transform_indices = @transform_3, window_bounds = array<i64: 1, 128>}, {pipeline_mode = #tpu.pipeline_mode<synchronous>, transform_indices = @transform_4, window_bounds = array<i64: 1, 128>}, {transform_indices = @transform_5, window_bounds = array<i64: 8, 128>}]} {
    %c0 = arith.constant 0 : index
    %c0_0 = arith.constant 0 : index
    %0 = vector.load %arg2[%c0, %c0_0] : memref<8x16xf32, #tpu.memory_space<vmem>>, vector<8x16xf32>
    %c0_1 = arith.constant 0 : index
    %c0_2 = arith.constant 0 : index
    %c0_3 = arith.constant 0 : index
    %1 = vector.load %arg3[%c0_1, %c0_2, %c0_3] : memref<1x16x128xf32, #tpu.memory_space<vmem>>, vector<1x16x128xf32>
    %2 = vector.shape_cast %1 : vector<1x16x128xf32> to vector<16x128xf32>
    %cst = arith.constant dense<0.000000e+00> : vector<8x128xf32>
    %3 = tpu.matmul %0, %2, %cst {dimension_numbers = #tpu.dot_dimension_numbers<[1], [0], [0], [1], [0, 0, 1, 1], [], []>, precision = #tpu.contract_precision<fp32>} : vector<8x16xf32>, vector<16x128xf32>, vector<8x128xf32> -> vector<8x128xf32>
    %c0_4 = arith.constant 0 : index
    %c0_5 = arith.constant 0 : index
    %c0_6 = arith.constant 0 : index
    %4 = vector.load %arg4[%c0_4, %c0_5, %c0_6] : memref<1x1x128xf32, #tpu.memory_space<vmem>>, vector<1x1x128xf32>
    %5 = vector.shape_cast %4 : vector<1x1x128xf32> to vector<1x128xf32>
    %6 = vector.broadcast %5 : vector<1x128xf32> to vector<8x128xf32>
    %7 = arith.addf %3, %6 : vector<8x128xf32>
    %c0_7 = arith.constant 0 : index
    %c0_8 = arith.constant 0 : index
    %8 = vector.load %arg5[%c0_7, %c0_8] : memref<1x128xf32, #tpu.memory_space<vmem>>, vector<1x128xf32>
    %9 = vector.broadcast %8 : vector<1x128xf32> to vector<8x128xf32>
    %10 = arith.maximumf %7, %9 : vector<8x128xf32>
    %c0_9 = arith.constant 0 : index
    %c0_10 = arith.constant 0 : index
    %11 = vector.load %arg6[%c0_9, %c0_10] : memref<1x128xf32, #tpu.memory_space<vmem>>, vector<1x128xf32>
    %12 = vector.broadcast %11 : vector<1x128xf32> to vector<8x128xf32>
    %13 = arith.minimumf %10, %12 : vector<8x128xf32>
    %c0_11 = arith.constant 0 : index
    %c0_12 = arith.constant 0 : index
    %14 = vector.load %arg7[%c0_11, %c0_12] : memref<8x128xf32, #tpu.memory_space<vmem>>, vector<8x128xf32>
    tpu.vector_store %arg7[%c0_11, %c0_12], %13 {strides = array<i32>} : memref<8x128xf32, #tpu.memory_space<vmem>>, vector<8x128xf32>,
    return
  }
  func.func @transform_0(%arg0: i32, %arg1: i32) -> (i32, i32) {
    %c0_i32 = arith.constant 0 : i32
    return %arg0, %arg1 : i32, i32
  }
  func.func @transform_1(%arg0: i32, %arg1: i32) -> (i32, i32, i32) {
    %c0_i32 = arith.constant 0 : i32
    %c0_i32_0 = arith.constant 0 : i32
    %c0_i32_1 = arith.constant 0 : i32
    return %arg1, %c0_i32, %c0_i32_0 : i32, i32, i32
  }
  func.func @transform_2(%arg0: i32, %arg1: i32) -> (i32, i32, i32) {
    %c0_i32 = arith.constant 0 : i32
    %c0_i32_0 = arith.constant 0 : i32
    %c0_i32_1 = arith.constant 0 : i32
    return %arg1, %c0_i32, %c0_i32_0 : i32, i32, i32
  }
  func.func @transform_3(%arg0: i32, %arg1: i32) -> (i32, i32) {
    %c0_i32 = arith.constant 0 : i32
    %c0_i32_0 = arith.constant 0 : i32
    %c0_i32_1 = arith.constant 0 : i32
    return %c0_i32, %c0_i32_0 : i32, i32
  }
  func.func @transform_4(%arg0: i32, %arg1: i32) -> (i32, i32) {
    %c0_i32 = arith.constant 0 : i32
    %c0_i32_0 = arith.constant 0 : i32
    %c0_i32_1 = arith.constant 0 : i32
    return %c0_i32, %c0_i32_0 : i32, i32
  }
  func.func @transform_5(%arg0: i32, %arg1: i32) -> (i32, i32) {
    %c0_i32 = arith.constant 0 : i32
    return %arg0, %arg1 : i32, i32
  }
}

</mosaic_0001>

<llo_original>
// kernel: tpu_custom_call.1
$region0: #{tpu_custom_call.1}
  #allocation0 [shape = 'u32[]', space=smem, size = 0x4, offset = 0x4, fixed_abs, tag = 'smem constant byte address 0x4 - core index']
  #allocation1 [shape = 'u32[144,128]{1,0:T(1,128)}', space=vmem, size = 0x12000, scoped, tag = 'internal scratch']
  %s0 = inlined_call_operand.hbm [shape: f32[16,16], index: 0, kind: input, shape index: {}]
  %s1 = inlined_call_operand.hbm [shape: f32[1,16,128], index: 1, kind: input, shape index: {}]
  %s2 = inlined_call_operand.vmem [shape: f32[1,1,128], index: 2, kind: input, shape index: {}]
  %s3 = inlined_call_operand.vmem [shape: f32[1,128], index: 3, kind: input, shape index: {}]
  %s4 = inlined_call_operand.vmem [shape: f32[1,128], index: 4, kind: input, shape index: {}]
  %s5 = inlined_call_operand.hbm [shape: f32[16,128], index: 5, kind: output, shape index: {}]
  %s6 = sld [smem:[#allocation0]]
  $region61: #{tpu_custom_call.1} parent=0
    _
  %s8 = ssub.s32 1, %s6
  %s9 = scalar_select 0, %s8, %s6
  $region1: #{tpu_custom_call.1} parent=0
    #allocation2 [shape = 'u8[8192]{0}', space=vmem, size = 0x2000, scoped, tag = 'input window, operand 0']
    #allocation3 [shape = 's32[2]{0}', space=sflag, size = 0x8, scoped, tag = 'scoped memory for tpu_custom_call.1']
    #allocation4 [shape = 's32[2]{0}', space=sflag, size = 0x8, scoped, tag = 'scoped memory for tpu_custom_call.1']
    #allocation5 [shape = 'u8[8192]{0}', space=vmem, size = 0x2000, scoped, tag = 'input window, operand 1, single buffered']
    #allocation6 [shape = 's32[1]{0}', space=sflag, size = 0x4, scoped, tag = 'scoped memory for tpu_custom_call.1']
    #allocation7 [shape = 'u8[8192]{0}', space=vmem, size = 0x2000, scoped, tag = 'output window, operand 0']
    %10 = vsyncpa [#allocation3], 0
    %s11 = scalar_lea.sflag [#allocation3], 1
    %12 = vsyncpa %s11, 0
    %13 = vsyncpa [#allocation6], 0
    %14 = vsyncpa [#allocation4], 0
    %s15 = scalar_lea.sflag [#allocation4], 1
    %16 = vsyncpa %s15, 0
    loop: start=0, step=1, limit=4
    $region2: #{tpu_custom_call.1} parent=1 // loop_pre_header
      _
    $region3: #{tpu_custom_call.1} parent=1 // loop_header
      %s18 = sphi 0, %s22
      %p19 = scmp.ge.s32.totalorder %s18, 4
      %s25 = sphi 0, %s37
      %s26 = sphi 0, %s33
      %s27 = sphi 0, %s25
      %s28 = sphi 0, %s26
      %s29 = sphi 0, %s27
      %s30 = sphi 0, %s28
      %s42 = sphi 0, %s44
      %s45 = sphi 0, %s42
      %s46 = sphi 0, %s45
      %s62 = sphi 0, %s46
      %s68 = sphi 0, %s70
      %s71 = sphi 0, %s68
      %s72 = sphi 0, %s71
      %s88 = sphi 0, %s72
      %s94 = sphi 0, %s96
      %s97 = sphi 0, %s94
      %s98 = sphi 0, %s97
      %s114 = sphi 0, %s98
      %s118 = sphi 0, %s118
      %s120 = sphi 0, %s118
      %s121 = sphi 0, %s120
      %s135 = sphi 0, %s121
      %s139 = sphi 0, %s139
      %s141 = sphi 0, %s139
      %s142 = sphi 0, %s141
      %s156 = sphi 0, %s142
      %s164 = sphi 0, %s166
      %s167 = sphi 0, %s164
      %s168 = sphi 0, %s167
      %s184 = sphi 0, %s168
    $region4: #{tpu_custom_call.1} parent=1 // loop_header_branch
      %21 = sbr.rel (%p19) target = $region8
    $region5: #{tpu_custom_call.1} parent=1 // loop_body
      %s23 = ssub.s32 %s18, 1
      %s24 = ssub.s32 %s18, 2
      %s31 = sadd.s32 1, %s26
      %p32 = scmp.ge.s32.totalorder %s31, 1
      %s33 = scalar_select %p32, 0, %s31
      %s34 = sadd.s32 1, %s25
      %s35 = scalar_select %p32, %s34, %s25
      %p36 = scmp.ge.s32.totalorder %s35, 2
      %s37 = scalar_select %p36, 0, %s35
      %s38 = ssub.s32 %s25, %s37
      %s39 = ssub.s32 %s26, %s33
      %s40 = sor.u32 %s38, %s39
      %p41 = scmp.eq.s32.totalorder %s40, 0
      %s43 = sadd.s32 %s42, 1
      %s44 = scalar_select %p41, %s42, %s43
      %p47 = pneg %p41
      %p48 = scmp.eq.s32.totalorder %s18, 1
      %p49 = por %p47, %p48
      %p50 = scmp.ne.s32.totalorder %s42, %s45
      %p51 = scmp.eq.s32.totalorder %s18, 0
      %p52 = por %p50, %p51
      %p53 = scmp.ne.s32.totalorder %s42, %s45
      %p54 = scmp.eq.s32.totalorder %s23, 1
      %p55 = por %p53, %p54
      %p56 = scmp.ne.s32.totalorder %s45, %s46
      %p57 = scmp.eq.s32.totalorder %s23, 0
      %p58 = por %p56, %p57
      %p59 = scmp.ne.s32.totalorder %s45, %s46
      %p60 = scmp.eq.s32.totalorder %s24, 1
      %p61 = por %p59, %p60
      %p63 = scmp.ne.s32.totalorder %s46, %s62
      %p64 = scmp.eq.s32.totalorder %s24, 0
      %p65 = por %p63, %p64
      %s66 = ssub.s32 %s26, %s33
      %p67 = scmp.eq.s32.totalorder %s66, 0
      %s69 = sadd.s32 %s68, 1
      %s70 = scalar_select %p67, %s68, %s69
      %p73 = pneg %p67
      %p74 = scmp.eq.s32.totalorder %s18, 1
      %p75 = por %p73, %p74
      %p76 = scmp.ne.s32.totalorder %s68, %s71
      %p77 = scmp.eq.s32.totalorder %s18, 0
      %p78 = por %p76, %p77
      %p79 = scmp.ne.s32.totalorder %s68, %s71
      %p80 = scmp.eq.s32.totalorder %s23, 1
      %p81 = por %p79, %p80
      %p82 = scmp.ne.s32.totalorder %s71, %s72
      %p83 = scmp.eq.s32.totalorder %s23, 0
      %p84 = por %p82, %p83
      %p85 = scmp.ne.s32.totalorder %s71, %s72
      %p86 = scmp.eq.s32.totalorder %s24, 1
      %p87 = por %p85, %p86
      %p89 = scmp.ne.s32.totalorder %s72, %s88
      %p90 = scmp.eq.s32.totalorder %s24, 0
      %p91 = por %p89, %p90
      %s92 = ssub.s32 %s26, %s33
      %p93 = scmp.eq.s32.totalorder %s92, 0
      %s95 = sadd.s32 %s94, 1
      %s96 = scalar_select %p93, %s94, %s95
      %p99 = pneg %p93
      %p100 = scmp.eq.s32.totalorder %s18, 1
      %p101 = por %p99, %p100
      %p102 = scmp.ne.s32.totalorder %s94, %s97
      %p103 = scmp.eq.s32.totalorder %s18, 0
      %p104 = por %p102, %p103
      %p105 = scmp.ne.s32.totalorder %s94, %s97
      %p106 = scmp.eq.s32.totalorder %s23, 1
      %p107 = por %p105, %p106
      %p108 = scmp.ne.s32.totalorder %s97, %s98
      %p109 = scmp.eq.s32.totalorder %s23, 0
      %p110 = por %p108, %p109
      %p111 = scmp.ne.s32.totalorder %s97, %s98
      %p112 = scmp.eq.s32.totalorder %s24, 1
      %p113 = por %p111, %p112
      %p115 = scmp.ne.s32.totalorder %s98, %s114
      %p116 = scmp.eq.s32.totalorder %s24, 0
      %p117 = por %p115, %p116
      %s119 = sadd.s32 %s118, 1
      %p122 = scmp.eq.s32.totalorder %s18, 1
      %p123 = scmp.ne.s32.totalorder %s118, %s120
      %p124 = scmp.eq.s32.totalorder %s18, 0
      %p125 = por %p123, %p124
      %p126 = scmp.ne.s32.totalorder %s118, %s120
      %p127 = scmp.eq.s32.totalorder %s23, 1
      %p128 = por %p126, %p127
      %p129 = scmp.ne.s32.totalorder %s120, %s121
      %p130 = scmp.eq.s32.totalorder %s23, 0
      %p131 = por %p129, %p130
      %p132 = scmp.ne.s32.totalorder %s120, %s121
      %p133 = scmp.eq.s32.totalorder %s24, 1
      %p134 = por %p132, %p133
      %p136 = scmp.ne.s32.totalorder %s121, %s135
      %p137 = scmp.eq.s32.totalorder %s24, 0
      %p138 = por %p136, %p137
      %s140 = sadd.s32 %s139, 1
      %p143 = scmp.eq.s32.totalorder %s18, 1
      %p144 = scmp.ne.s32.totalorder %s139, %s141
      %p145 = scmp.eq.s32.totalorder %s18, 0
      %p146 = por %p144, %p145
      %p147 = scmp.ne.s32.totalorder %s139, %s141
      %p148 = scmp.eq.s32.totalorder %s23, 1
      %p149 = por %p147, %p148
      %p150 = scmp.ne.s32.totalorder %s141, %s142
      %p151 = scmp.eq.s32.totalorder %s23, 0
      %p152 = por %p150, %p151
      %p153 = scmp.ne.s32.totalorder %s141, %s142
      %p154 = scmp.eq.s32.totalorder %s24, 1
      %p155 = por %p153, %p154
      %p157 = scmp.ne.s32.totalorder %s142, %s156
      %p158 = scmp.eq.s32.totalorder %s24, 0
      %p159 = por %p157, %p158
      %s160 = ssub.s32 %s25, %s37
      %s161 = ssub.s32 %s26, %s33
      %s162 = sor.u32 %s160, %s161
      %p163 = scmp.eq.s32.totalorder %s162, 0
      %s165 = sadd.s32 %s164, 1
      %s166 = scalar_select %p163, %s164, %s165
      %p169 = pneg %p163
      %p170 = scmp.eq.s32.totalorder %s18, 1
      %p171 = por %p169, %p170
      %p172 = scmp.ne.s32.totalorder %s164, %s167
      %p173 = scmp.eq.s32.totalorder %s18, 0
      %p174 = por %p172, %p173
      %p175 = scmp.ne.s32.totalorder %s164, %s167
      %p176 = scmp.eq.s32.totalorder %s23, 1
      %p177 = por %p175, %p176
      %p178 = scmp.ne.s32.totalorder %s167, %s168
      %p179 = scmp.eq.s32.totalorder %s23, 0
      %p180 = por %p178, %p179
      %p181 = scmp.ne.s32.totalorder %s167, %s168
      %p182 = scmp.eq.s32.totalorder %s24, 1
      %p183 = por %p181, %p182
      %p185 = scmp.ne.s32.totalorder %s168, %s184
      %p186 = scmp.eq.s32.totalorder %s24, 0
      %p187 = por %p185, %p186
      %p188 = scmp.le.s32.totalorder 1, %s18
      %p189 = scmp.lt.s32.totalorder %s18, 3
      %p190 = pnand %p188, %p189
      %p191 = pneg %p190
      // Predicated region
      $region9: #{tpu_custom_call.1} parent=5 // pred_check
        _
      $region10: #{tpu_custom_call.1} parent=5 // pred_check_branch
        %193 = sbr.rel (%p190) target = $region12
      $region11: #{tpu_custom_call.1} parent=5 // pred_region
        %s194 = ssub.s32 %s18, 1
        // Predicated region
        $region13: #{tpu_custom_call.1} parent=11 // pred_check
          %p195 = pneg %p84
        $region14: #{tpu_custom_call.1} parent=11 // pred_check_branch
          %197 = sbr.rel (%p195) target = $region16
        $region15: #{tpu_custom_call.1} parent=11 // pred_region
          %s199 = ssub.s32 256, 256
          %200 = vsyncadd [#allocation6], %s199
          %s201 = smul.addr %s28, 2
          %s202 = smul.addr %s201, 128
          %s203 = scalar_lea.hbm %s1, %s202
          %s204 = sshll.u32 [#allocation5], 4
          %s205 = int_to_ptr.vmem [resolvable:$true] %s204
          %210 = dma.hbm_to_vmem [thread:$0]  %s203, 256, %s205, [#allocation6], 128, 128, 8
        $region16: #{tpu_custom_call.1} parent=11 // pred_fallthru
          _
        // Predicated region
        $region17: #{tpu_custom_call.1} parent=11 // pred_check
          %p211 = pneg %p110
        $region18: #{tpu_custom_call.1} parent=11 // pred_check_branch
          %213 = sbr.rel (%p211) target = $region20
        $region19: #{tpu_custom_call.1} parent=11 // pred_region
          %p214 = scmp.lt.s32.totalorder %s28, 0
          %s215 = scalar_select %p214, %s28, 0
          %s216 = scalar_lea.vmem %s2, %s215
        $region20: #{tpu_custom_call.1} parent=11 // pred_fallthru
          _
        // Predicated region
        $region21: #{tpu_custom_call.1} parent=11 // pred_check
          %p217 = pneg %p131
        $region22: #{tpu_custom_call.1} parent=11 // pred_check_branch
          %219 = sbr.rel (%p217) target = $region24
        $region23: #{tpu_custom_call.1} parent=11 // pred_region
          _
        $region24: #{tpu_custom_call.1} parent=11 // pred_fallthru
          _
        // Predicated region
        $region25: #{tpu_custom_call.1} parent=11 // pred_check
          %p220 = pneg %p152
        $region26: #{tpu_custom_call.1} parent=11 // pred_check_branch
          %222 = sbr.rel (%p220) target = $region28
        $region27: #{tpu_custom_call.1} parent=11 // pred_region
          _
        $region28: #{tpu_custom_call.1} parent=11 // pred_fallthru
          _
      $region12: #{tpu_custom_call.1} parent=5 // pred_fallthru
        _
      %p223 = scmp.lt.s32.totalorder %s18, 2
      // Predicated region
      $region29: #{tpu_custom_call.1} parent=5 // pred_check
        %p224 = pneg %p223
      $region30: #{tpu_custom_call.1} parent=5 // pred_check_branch
        %226 = sbr.rel (%p224) target = $region32
      $region31: #{tpu_custom_call.1} parent=5 // pred_region
        // Predicated region
        $region33: #{tpu_custom_call.1} parent=31 // pred_check
          %p227 = pneg %p52
        $region34: #{tpu_custom_call.1} parent=31 // pred_check_branch
          %229 = sbr.rel (%p227) target = $region36
        $region35: #{tpu_custom_call.1} parent=31 // pred_region
          %s230 = sand.u32 %s42, 1
          %s231 = scalar_lea.sflag [#allocation3], %s230
          %s232 = sand.u32 %s42, 1
          %s233 = smul.addr %s232, 8
          %s234 = scalar_lea.vmem [#allocation2], %s233
          %s236 = ssub.s32 128, 128
          %237 = vsyncadd %s231, %s236
          %s238 = sadd.s32 %s26, %s25
          %s239 = smul.addr %s238, 128
          %s240 = scalar_lea.hbm %s0, %s239
          %s242 = sshll.u32 %s234, 4
          %s243 = int_to_ptr.vmem [resolvable:$true] %s242
          %245 = dma.hbm_to_vmem [thread:$0]  %s240, 128, %s243, %s231
        $region36: #{tpu_custom_call.1} parent=31 // pred_fallthru
          _
      $region32: #{tpu_custom_call.1} parent=5 // pred_fallthru
        _
      %p246 = scmp.le.s32.totalorder 1, %s18
      %p247 = scmp.lt.s32.totalorder %s18, 3
      %p248 = pnand %p246, %p247
      %p249 = pneg %p248
      // Predicated region
      $region37: #{tpu_custom_call.1} parent=5 // pred_check
        _
      $region38: #{tpu_custom_call.1} parent=5 // pred_check_branch
        %251 = sbr.rel (%p248) target = $region40
      $region39: #{tpu_custom_call.1} parent=5 // pred_region
        %s252 = ssub.s32 %s18, 1
        %s253 = sand.u32 %s45, 1
        %s254 = scalar_lea.sflag [#allocation3], %s253
        %s255 = sand.u32 %s45, 1
        %s256 = smul.addr %s255, 8
        %s257 = scalar_lea.vmem [#allocation2], %s256
        // Predicated region
        $region41: #{tpu_custom_call.1} parent=39 // pred_check
          %p258 = pneg %p58
        $region42: #{tpu_custom_call.1} parent=39 // pred_check_branch
          %260 = sbr.rel (%p258) target = $region44
        $region43: #{tpu_custom_call.1} parent=39 // pred_region
          %261 = dma.done %s254, 128
        $region44: #{tpu_custom_call.1} parent=39 // pred_fallthru
          _
        // Predicated region
        $region45: #{tpu_custom_call.1} parent=39 // pred_check
          %p262 = pneg %p84
        $region46: #{tpu_custom_call.1} parent=39 // pred_check_branch
          %264 = sbr.rel (%p262) target = $region48
        $region47: #{tpu_custom_call.1} parent=39 // pred_region
          %265 = dma.done [#allocation6], 256
        $region48: #{tpu_custom_call.1} parent=39 // pred_fallthru
          _
        %s266 = sand.u32 %s45, 1
        %s267 = scalar_lea.sflag [#allocation3], %s266
        %s268 = sand.u32 %s45, 1
        %s269 = smul.addr %s268, 8
        %s270 = scalar_lea.vmem [#allocation2], %s269
        %p271 = pneg %p58
        %p272 = pneg %p55
        %p273 = pneg %p84
        %p274 = pneg %p81
        %p275 = scmp.lt.s32.totalorder %s28, 0
        %s276 = scalar_select %p275, %s28, 0
        %s277 = scalar_lea.vmem %s2, %s276
        %p278 = pneg %p110
        %p279 = pneg %p107
        %p280 = pneg %p131
        %p281 = pneg %p128
        %p282 = pneg %p152
        %p283 = pneg %p149
        %p284 = pneg %p180
        %p285 = pneg %p177
        %s286 = sand.u32 %s167, 1
        %s287 = scalar_lea.sflag [#allocation4], %s286
        %s288 = sand.u32 %s167, 1
        %s289 = smul.addr %s288, 8
        %s290 = scalar_lea.vmem [#allocation7], %s289
        %p291 = scmp.lt.s32.totalorder %s28, 0
        %s292 = scalar_select %p291, %s28, 0
        %s293 = scalar_lea.vmem %s2, %s292
        %v294 = vld [vmem:[%s257] sm:$0xff]
        %v295 = vld [vmem:[#allocation5] sm:$0xff]
        %v296 = vld [vmem:[#allocation5 + $0x8] sm:$0xff]
        %v297 = vld [vmem:[%s293] sm:$0x1]
        %v299 = vlaneseq
        %v300 = vshrl.u32 %v299, 7
        %v301 = vsub.s32 0, %v300
        %v302 = vrot.slane %v297, %v301
        %vm304 = vcmask 130048
        %v306 = vsel %vm304, %v294, 0
        %308 = vmatprep.subr.mxu0 0.0
        %v309 = vand.u32 %v295, 4294901760
        %310 = vmatpush1.msra.mxu0 %v309
        %311 = vmatprep.subr.mxu0 0.0
        %v312 = vand.u32 %v296, 4294901760
        %313 = vmatpush1.msra.mxu0 %v312
        %314 = vmatprep.subr.mxu0 0.0
        %315 = vmatpush1.msra.mxu0 0.0
        %316 = vmatprep.subr.mxu0 0.0
        %317 = vmatpush1.msra.mxu0 0.0
        %318 = vmatprep.subr.mxu0 0.0
        %319 = vmatpush1.msra.mxu0 0.0
        %320 = vmatprep.subr.mxu0 0.0
        %321 = vmatpush1.msra.mxu0 0.0
        %322 = vmatprep.subr.mxu0 0.0
        %323 = vmatpush1.msra.mxu0 0.0
        %324 = vmatprep.subr.mxu0 0.0
        %325 = vmatpush1.msra.mxu0 0.0
        %326 = vmatprep.subr.mxu0 0.0
        %327 = vmatpush1.msra.mxu0 0.0
        %328 = vmatprep.subr.mxu0 0.0
        %329 = vmatpush1.msra.mxu0 0.0
        %330 = vmatprep.subr.mxu0 0.0
        %331 = vmatpush1.msra.mxu0 0.0
        %332 = vmatprep.subr.mxu0 0.0
        %333 = vmatpush1.msra.mxu0 0.0
        %334 = vmatprep.subr.mxu0 0.0
        %335 = vmatpush1.msra.mxu0 0.0
        %336 = vmatprep.subr.mxu0 0.0
        %337 = vmatpush1.msra.mxu0 0.0
        %338 = vmatprep.subr.mxu0 0.0
        %339 = vmatpush1.msra.mxu0 0.0
        %340 = vmatprep.subr.mxu0 0.0
        %341 = vmatpush1.msra.mxu0 0.0
        %342 = vmatprep.subr.mxu0 0.0
        %343 = vmatpush1.msra.mxu0 0.0
        %344 = vmatprep.subr.mxu0 0.0
        %345 = vmatpush1.msra.mxu0 0.0
        %346 = vmatprep.subr.mxu0 0.0
        %347 = vmatpush1.msra.mxu0 0.0
        %348 = vmatprep.subr.mxu0 0.0
        %349 = vmatpush1.msra.mxu0 0.0
        %350 = vmatprep.subr.mxu0 0.0
        %351 = vmatpush1.msra.mxu0 0.0
        %352 = vmatprep.subr.mxu0 0.0
        %353 = vmatpush1.msra.mxu0 0.0
        %354 = vmatprep.subr.mxu0 0.0
        %355 = vmatpush1.msra.mxu0 0.0
        %356 = vmatprep.subr.mxu0 0.0
        %357 = vmatpush1.msra.mxu0 0.0
        %358 = vmatprep.subr.mxu0 0.0
        %359 = vmatpush1.msra.mxu0 0.0
        %360 = vmatprep.subr.mxu0 0.0
        %361 = vmatpush1.msra.mxu0 0.0
        %362 = vmatprep.subr.mxu0 0.0
        %363 = vmatpush1.msra.mxu0 0.0
        %364 = vmatprep.subr.mxu0 0.0
        %365 = vmatpush1.msra.mxu0 0.0
        %366 = vmatprep.subr.mxu0 0.0
        %367 = vmatpush1.msra.mxu0 0.0
        %368 = vmatprep.subr.mxu0 0.0
        %369 = vmatpush1.msra.mxu0 0.0
        %370 = vmatprep.subr.mxu0 0.0
        %371 = vmatpush1.msra.mxu0 0.0
        %372 = vmatprep.subr.mxu0 0.0
        %373 = vmatpush1.msra.mxu0 0.0
        %374 = vmatprep.mubr.f32.mxu0 0.0
        %v375 = vand.u32 %v306, 4294901760
        %v376 = vsub.f32 %v306, %v375
        %v377 = vand.u32 %v376, 4294901760
        %v378 = vsub.f32 %v376, %v377
        %v379 = vand.u32 %v378, 4294901760
        %380 = vmatmul.mubr.f32.gmra.mrb[0].mxu0 %v379
        %v381 = vpop.f32.mrb[0].mxu0
        %v382 = vadd.f32 %v302, %v381
        %v383 = vpop.f32.mrb[0].mxu0
        %384 = vdwg.mxu0
        %385 = vmatprep.subr.mxu0 0.0
        %v386 = vand.u32 %v295, 4294901760
        %v387 = vsub.f32 %v295, %v386
        %v388 = vand.u32 %v387, 4294901760
        %v389 = vsub.f32 %v387, %v388
        %v390 = vand.u32 %v389, 4294901760
        %391 = vmatpush1.msra.mxu0 %v390
        %392 = vmatprep.subr.mxu0 0.0
        %v393 = vand.u32 %v296, 4294901760
        %v394 = vsub.f32 %v296, %v393
        %v395 = vand.u32 %v394, 4294901760
        %v396 = vsub.f32 %v394, %v395
        %v397 = vand.u32 %v396, 4294901760
        %398 = vmatpush1.msra.mxu0 %v397
        %399 = vmatprep.subr.mxu0 0.0
        %400 = vmatpush1.msra.mxu0 0.0
        %401 = vmatprep.subr.mxu0 0.0
        %402 = vmatpush1.msra.mxu0 0.0
        %403 = vmatprep.subr.mxu0 0.0
        %404 = vmatpush1.msra.mxu0 0.0
        %405 = vmatprep.subr.mxu0 0.0
        %406 = vmatpush1.msra.mxu0 0.0
        %407 = vmatprep.subr.mxu0 0.0
        %408 = vmatpush1.msra.mxu0 0.0
        %409 = vmatprep.subr.mxu0 0.0
        %410 = vmatpush1.msra.mxu0 0.0
        %411 = vmatprep.subr.mxu0 0.0
        %412 = vmatpush1.msra.mxu0 0.0
        %413 = vmatprep.subr.mxu0 0.0
        %414 = vmatpush1.msra.mxu0 0.0
        %415 = vmatprep.subr.mxu0 0.0
        %416 = vmatpush1.msra.mxu0 0.0
        %417 = vmatprep.subr.mxu0 0.0
        %418 = vmatpush1.msra.mxu0 0.0
        %419 = vmatprep.subr.mxu0 0.0
        %420 = vmatpush1.msra.mxu0 0.0
        %421 = vmatprep.subr.mxu0 0.0
        %422 = vmatpush1.msra.mxu0 0.0
        %423 = vmatprep.subr.mxu0 0.0
        %424 = vmatpush1.msra.mxu0 0.0
        %425 = vmatprep.subr.mxu0 0.0
        %426 = vmatpush1.msra.mxu0 0.0
        %427 = vmatprep.subr.mxu0 0.0
        %428 = vmatpush1.msra.mxu0 0.0
        %429 = vmatprep.subr.mxu0 0.0
        %430 = vmatpush1.msra.mxu0 0.0
        %431 = vmatprep.subr.mxu0 0.0
        %432 = vmatpush1.msra.mxu0 0.0
        %433 = vmatprep.subr.mxu0 0.0
        %434 = vmatpush1.msra.mxu0 0.0
        %435 = vmatprep.subr.mxu0 0.0
        %436 = vmatpush1.msra.mxu0 0.0
        %437 = vmatprep.subr.mxu0 0.0
        %438 = vmatpush1.msra.mxu0 0.0
        %439 = vmatprep.subr.mxu0 0.0
        %440 = vmatpush1.msra.mxu0 0.0
        %441 = vmatprep.subr.mxu0 0.0
        %442 = vmatpush1.msra.mxu0 0.0
        %443 = vmatprep.subr.mxu0 0.0
        %444 = vmatpush1.msra.mxu0 0.0
        %445 = vmatprep.subr.mxu0 0.0
        %446 = vmatpush1.msra.mxu0 0.0
        %447 = vmatprep.subr.mxu0 0.0
        %448 = vmatpush1.msra.mxu0 0.0
        %449 = vmatprep.subr.mxu0 0.0
        %450 = vmatpush1.msra.mxu0 0.0
        %451 = vmatprep.subr.mxu0 0.0
        %452 = vmatpush1.msra.mxu0 0.0
        %453 = vmatprep.subr.mxu0 0.0
        %454 = vmatpush1.msra.mxu0 0.0
        %455 = vmatprep.subr.mxu0 0.0
        %456 = vmatpush1.msra.mxu0 0.0
        %457 = vmatprep.subr.mxu0 0.0
        %458 = vmatpush1.msra.mxu0 0.0
        %459 = vmatprep.mubr.f32.mxu0 0.0
        %v460 = vand.u32 %v306, 4294901760
        %461 = vmatmul.mubr.f32.gmra.mrb[0].mxu0 %v460
        %v462 = vpop.f32.mrb[0].mxu0
        %v463 = vadd.f32 %v382, %v462
        %v464 = vpop.f32.mrb[0].mxu0
        %465 = vdwg.mxu0
        %466 = vmatprep.subr.mxu0 0.0
        %v467 = vand.u32 %v295, 4294901760
        %v468 = vsub.f32 %v295, %v467
        %469 = vmatpush1.msra.mxu0 %v468
        %470 = vmatprep.subr.mxu0 0.0
        %v471 = vand.u32 %v296, 4294901760
        %v472 = vsub.f32 %v296, %v471
        %473 = vmatpush1.msra.mxu0 %v472
        %474 = vmatprep.subr.mxu0 0.0
        %475 = vmatpush1.msra.mxu0 0.0
        %476 = vmatprep.subr.mxu0 0.0
        %477 = vmatpush1.msra.mxu0 0.0
        %478 = vmatprep.subr.mxu0 0.0
        %479 = vmatpush1.msra.mxu0 0.0
        %480 = vmatprep.subr.mxu0 0.0
        %481 = vmatpush1.msra.mxu0 0.0
        %482 = vmatprep.subr.mxu0 0.0
        %483 = vmatpush1.msra.mxu0 0.0
        %484 = vmatprep.subr.mxu0 0.0
        %485 = vmatpush1.msra.mxu0 0.0
        %486 = vmatprep.subr.mxu0 0.0
        %487 = vmatpush1.msra.mxu0 0.0
        %488 = vmatprep.subr.mxu0 0.0
        %489 = vmatpush1.msra.mxu0 0.0
        %490 = vmatprep.subr.mxu0 0.0
        %491 = vmatpush1.msra.mxu0 0.0
        %492 = vmatprep.subr.mxu0 0.0
        %493 = vmatpush1.msra.mxu0 0.0
        %494 = vmatprep.subr.mxu0 0.0
        %495 = vmatpush1.msra.mxu0 0.0
        %496 = vmatprep.subr.mxu0 0.0
        %497 = vmatpush1.msra.mxu0 0.0
        %498 = vmatprep.subr.mxu0 0.0
        %499 = vmatpush1.msra.mxu0 0.0
        %500 = vmatprep.subr.mxu0 0.0
        %501 = vmatpush1.msra.mxu0 0.0
        %502 = vmatprep.subr.mxu0 0.0
        %503 = vmatpush1.msra.mxu0 0.0
        %504 = vmatprep.subr.mxu0 0.0
        %505 = vmatpush1.msra.mxu0 0.0
        %506 = vmatprep.subr.mxu0 0.0
        %507 = vmatpush1.msra.mxu0 0.0
        %508 = vmatprep.subr.mxu0 0.0
        %509 = vmatpush1.msra.mxu0 0.0
        %510 = vmatprep.subr.mxu0 0.0
        %511 = vmatpush1.msra.mxu0 0.0
        %512 = vmatprep.subr.mxu0 0.0
        %513 = vmatpush1.msra.mxu0 0.0
        %514 = vmatprep.subr.mxu0 0.0
        %515 = vmatpush1.msra.mxu0 0.0
        %516 = vmatprep.subr.mxu0 0.0
        %517 = vmatpush1.msra.mxu0 0.0
        %518 = vmatprep.subr.mxu0 0.0
        %519 = vmatpush1.msra.mxu0 0.0
        %520 = vmatprep.subr.mxu0 0.0
        %521 = vmatpush1.msra.mxu0 0.0
        %522 = vmatprep.subr.mxu0 0.0
        %523 = vmatpush1.msra.mxu0 0.0
        %524 = vmatprep.subr.mxu0 0.0
        %525 = vmatpush1.msra.mxu0 0.0
        %526 = vmatprep.subr.mxu0 0.0
        %527 = vmatpush1.msra.mxu0 0.0
        %528 = vmatprep.subr.mxu0 0.0
        %529 = vmatpush1.msra.mxu0 0.0
        %530 = vmatprep.subr.mxu0 0.0
        %531 = vmatpush1.msra.mxu0 0.0
        %532 = vmatprep.subr.mxu0 0.0
        %533 = vmatpush1.msra.mxu0 0.0
        %534 = vmatprep.mubr.f32.mxu0 0.0
        %v535 = vand.u32 %v306, 4294901760
        %v536 = vsub.f32 %v306, %v535
        %537 = vmatmul.mubr.f32.gmra.mrb[0].mxu0 %v536
        %v538 = vpop.f32.mrb[0].mxu0
        %v539 = vadd.f32 %v463, %v538
        %v540 = vpop.f32.mrb[0].mxu0
        %541 = vdwg.mxu0
        %542 = vmatprep.subr.mxu0 0.0
        %v543 = vand.u32 %v295, 4294901760
        %544 = vmatpush1.msra.mxu0 %v543
        %545 = vmatprep.subr.mxu0 0.0
        %v546 = vand.u32 %v296, 4294901760
        %547 = vmatpush1.msra.mxu0 %v546
        %548 = vmatprep.subr.mxu0 0.0
        %549 = vmatpush1.msra.mxu0 0.0
        %550 = vmatprep.subr.mxu0 0.0
        %551 = vmatpush1.msra.mxu0 0.0
        %552 = vmatprep.subr.mxu0 0.0
        %553 = vmatpush1.msra.mxu0 0.0
        %554 = vmatprep.subr.mxu0 0.0
        %555 = vmatpush1.msra.mxu0 0.0
        %556 = vmatprep.subr.mxu0 0.0
        %557 = vmatpush1.msra.mxu0 0.0
        %558 = vmatprep.subr.mxu0 0.0
        %559 = vmatpush1.msra.mxu0 0.0
        %560 = vmatprep.subr.mxu0 0.0
        %561 = vmatpush1.msra.mxu0 0.0
        %562 = vmatprep.subr.mxu0 0.0
        %563 = vmatpush1.msra.mxu0 0.0
        %564 = vmatprep.subr.mxu0 0.0
        %565 = vmatpush1.msra.mxu0 0.0
        %566 = vmatprep.subr.mxu0 0.0
        %567 = vmatpush1.msra.mxu0 0.0
        %568 = vmatprep.subr.mxu0 0.0
        %569 = vmatpush1.msra.mxu0 0.0
        %570 = vmatprep.subr.mxu0 0.0
        %571 = vmatpush1.msra.mxu0 0.0
        %572 = vmatprep.subr.mxu0 0.0
        %573 = vmatpush1.msra.mxu0 0.0
        %574 = vmatprep.subr.mxu0 0.0
        %575 = vmatpush1.msra.mxu0 0.0
        %576 = vmatprep.subr.mxu0 0.0
        %577 = vmatpush1.msra.mxu0 0.0
        %578 = vmatprep.subr.mxu0 0.0
        %579 = vmatpush1.msra.mxu0 0.0
        %580 = vmatprep.subr.mxu0 0.0
        %581 = vmatpush1.msra.mxu0 0.0
        %582 = vmatprep.subr.mxu0 0.0
        %583 = vmatpush1.msra.mxu0 0.0
        %584 = vmatprep.subr.mxu0 0.0
        %585 = vmatpush1.msra.mxu0 0.0
        %586 = vmatprep.subr.mxu0 0.0
        %587 = vmatpush1.msra.mxu0 0.0
        %588 = vmatprep.subr.mxu0 0.0
        %589 = vmatpush1.msra.mxu0 0.0
        %590 = vmatprep.subr.mxu0 0.0
        %591 = vmatpush1.msra.mxu0 0.0
        %592 = vmatprep.subr.mxu0 0.0
        %593 = vmatpush1.msra.mxu0 0.0
        %594 = vmatprep.subr.mxu0 0.0
        %595 = vmatpush1.msra.mxu0 0.0
        %596 = vmatprep.subr.mxu0 0.0
        %597 = vmatpush1.msra.mxu0 0.0
        %598 = vmatprep.subr.mxu0 0.0
        %599 = vmatpush1.msra.mxu0 0.0
        %600 = vmatprep.subr.mxu0 0.0
        %601 = vmatpush1.msra.mxu0 0.0
        %602 = vmatprep.subr.mxu0 0.0
        %603 = vmatpush1.msra.mxu0 0.0
        %604 = vmatprep.subr.mxu0 0.0
        %605 = vmatpush1.msra.mxu0 0.0
        %606 = vmatprep.subr.mxu0 0.0
        %607 = vmatpush1.msra.mxu0 0.0
        %608 = vmatprep.mubr.f32.mxu0 0.0
        %v609 = vand.u32 %v306, 4294901760
        %v610 = vsub.f32 %v306, %v609
        %v611 = vand.u32 %v610, 4294901760
        %612 = vmatmul.mubr.f32.gmra.mrb[0].mxu0 %v611
        %v613 = vpop.f32.mrb[0].mxu0
        %v614 = vadd.f32 %v539, %v613
        %v615 = vpop.f32.mrb[0].mxu0
        %616 = vdwg.mxu0
        %617 = vmatprep.subr.mxu0 0.0
        %v618 = vand.u32 %v295, 4294901760
        %v619 = vsub.f32 %v295, %v618
        %v620 = vand.u32 %v619, 4294901760
        %621 = vmatpush1.msra.mxu0 %v620
        %622 = vmatprep.subr.mxu0 0.0
        %v623 = vand.u32 %v296, 4294901760
        %v624 = vsub.f32 %v296, %v623
        %v625 = vand.u32 %v624, 4294901760
        %626 = vmatpush1.msra.mxu0 %v625
        %627 = vmatprep.subr.mxu0 0.0
        %628 = vmatpush1.msra.mxu0 0.0
        %629 = vmatprep.subr.mxu0 0.0
        %630 = vmatpush1.msra.mxu0 0.0
        %631 = vmatprep.subr.mxu0 0.0
        %632 = vmatpush1.msra.mxu0 0.0
        %633 = vmatprep.subr.mxu0 0.0
        %634 = vmatpush1.msra.mxu0 0.0
        %635 = vmatprep.subr.mxu0 0.0
        %636 = vmatpush1.msra.mxu0 0.0
        %637 = vmatprep.subr.mxu0 0.0
        %638 = vmatpush1.msra.mxu0 0.0
        %639 = vmatprep.subr.mxu0 0.0
        %640 = vmatpush1.msra.mxu0 0.0
        %641 = vmatprep.subr.mxu0 0.0
        %642 = vmatpush1.msra.mxu0 0.0
        %643 = vmatprep.subr.mxu0 0.0
        %644 = vmatpush1.msra.mxu0 0.0
        %645 = vmatprep.subr.mxu0 0.0
        %646 = vmatpush1.msra.mxu0 0.0
        %647 = vmatprep.subr.mxu0 0.0
        %648 = vmatpush1.msra.mxu0 0.0
        %649 = vmatprep.subr.mxu0 0.0
        %650 = vmatpush1.msra.mxu0 0.0
        %651 = vmatprep.subr.mxu0 0.0
        %652 = vmatpush1.msra.mxu0 0.0
        %653 = vmatprep.subr.mxu0 0.0
        %654 = vmatpush1.msra.mxu0 0.0
        %655 = vmatprep.subr.mxu0 0.0
        %656 = vmatpush1.msra.mxu0 0.0
        %657 = vmatprep.subr.mxu0 0.0
        %658 = vmatpush1.msra.mxu0 0.0
        %659 = vmatprep.subr.mxu0 0.0
        %660 = vmatpush1.msra.mxu0 0.0
        %661 = vmatprep.subr.mxu0 0.0
        %662 = vmatpush1.msra.mxu0 0.0
        %663 = vmatprep.subr.mxu0 0.0
        %664 = vmatpush1.msra.mxu0 0.0
        %665 = vmatprep.subr.mxu0 0.0
        %666 = vmatpush1.msra.mxu0 0.0
        %667 = vmatprep.subr.mxu0 0.0
        %668 = vmatpush1.msra.mxu0 0.0
        %669 = vmatprep.subr.mxu0 0.0
        %670 = vmatpush1.msra.mxu0 0.0
        %671 = vmatprep.subr.mxu0 0.0
        %672 = vmatpush1.msra.mxu0 0.0
        %673 = vmatprep.subr.mxu0 0.0
        %674 = vmatpush1.msra.mxu0 0.0
        %675 = vmatprep.subr.mxu0 0.0
        %676 = vmatpush1.msra.mxu0 0.0
        %677 = vmatprep.subr.mxu0 0.0
        %678 = vmatpush1.msra.mxu0 0.0
        %679 = vmatprep.subr.mxu0 0.0
        %680 = vmatpush1.msra.mxu0 0.0
        %681 = vmatprep.subr.mxu0 0.0
        %682 = vmatpush1.msra.mxu0 0.0
        %683 = vmatprep.subr.mxu0 0.0
        %684 = vmatpush1.msra.mxu0 0.0
        %685 = vmatprep.subr.mxu0 0.0
        %686 = vmatpush1.msra.mxu0 0.0
        %687 = vmatprep.mubr.f32.mxu0 0.0
        %v688 = vand.u32 %v306, 4294901760
        %689 = vmatmul.mubr.f32.gmra.mrb[0].mxu0 %v688
        %v690 = vpop.f32.mrb[0].mxu0
        %v691 = vadd.f32 %v614, %v690
        %v692 = vpop.f32.mrb[0].mxu0
        %693 = vdwg.mxu0
        %694 = vmatprep.subr.mxu0 0.0
        %v695 = vand.u32 %v295, 4294901760
        %696 = vmatpush1.msra.mxu0 %v695
        %697 = vmatprep.subr.mxu0 0.0
        %v698 = vand.u32 %v296, 4294901760
        %699 = vmatpush1.msra.mxu0 %v698
        %700 = vmatprep.subr.mxu0 0.0
        %701 = vmatpush1.msra.mxu0 0.0
        %702 = vmatprep.subr.mxu0 0.0
        %703 = vmatpush1.msra.mxu0 0.0
        %704 = vmatprep.subr.mxu0 0.0
        %705 = vmatpush1.msra.mxu0 0.0
        %706 = vmatprep.subr.mxu0 0.0
        %707 = vmatpush1.msra.mxu0 0.0
        %708 = vmatprep.subr.mxu0 0.0
        %709 = vmatpush1.msra.mxu0 0.0
        %710 = vmatprep.subr.mxu0 0.0
        %711 = vmatpush1.msra.mxu0 0.0
        %712 = vmatprep.subr.mxu0 0.0
        %713 = vmatpush1.msra.mxu0 0.0
        %714 = vmatprep.subr.mxu0 0.0
        %715 = vmatpush1.msra.mxu0 0.0
        %716 = vmatprep.subr.mxu0 0.0
        %717 = vmatpush1.msra.mxu0 0.0
        %718 = vmatprep.subr.mxu0 0.0
        %719 = vmatpush1.msra.mxu0 0.0
        %720 = vmatprep.subr.mxu0 0.0
        %721 = vmatpush1.msra.mxu0 0.0
        %722 = vmatprep.subr.mxu0 0.0
        %723 = vmatpush1.msra.mxu0 0.0
        %724 = vmatprep.subr.mxu0 0.0
        %725 = vmatpush1.msra.mxu0 0.0
        %726 = vmatprep.subr.mxu0 0.0
        %727 = vmatpush1.msra.mxu0 0.0
        %728 = vmatprep.subr.mxu0 0.0
        %729 = vmatpush1.msra.mxu0 0.0
        %730 = vmatprep.subr.mxu0 0.0
        %731 = vmatpush1.msra.mxu0 0.0
        %732 = vmatprep.subr.mxu0 0.0
        %733 = vmatpush1.msra.mxu0 0.0
        %734 = vmatprep.subr.mxu0 0.0
        %735 = vmatpush1.msra.mxu0 0.0
        %736 = vmatprep.subr.mxu0 0.0
        %737 = vmatpush1.msra.mxu0 0.0
        %738 = vmatprep.subr.mxu0 0.0
        %739 = vmatpush1.msra.mxu0 0.0
        %740 = vmatprep.subr.mxu0 0.0
        %741 = vmatpush1.msra.mxu0 0.0
        %742 = vmatprep.subr.mxu0 0.0
        %743 = vmatpush1.msra.mxu0 0.0
        %744 = vmatprep.subr.mxu0 0.0
        %745 = vmatpush1.msra.mxu0 0.0
        %746 = vmatprep.subr.mxu0 0.0
        %747 = vmatpush1.msra.mxu0 0.0
        %748 = vmatprep.subr.mxu0 0.0
        %749 = vmatpush1.msra.mxu0 0.0
        %750 = vmatprep.subr.mxu0 0.0
        %751 = vmatpush1.msra.mxu0 0.0
        %752 = vmatprep.subr.mxu0 0.0
        %753 = vmatpush1.msra.mxu0 0.0
        %754 = vmatprep.subr.mxu0 0.0
        %755 = vmatpush1.msra.mxu0 0.0
        %756 = vmatprep.subr.mxu0 0.0
        %757 = vmatpush1.msra.mxu0 0.0
        %758 = vmatprep.subr.mxu0 0.0
        %759 = vmatpush1.msra.mxu0 0.0
        %760 = vmatprep.mubr.f32.mxu0 0.0
        %v761 = vand.u32 %v306, 4294901760
        %762 = vmatmul.mubr.f32.gmra.mrb[0].mxu0 %v761
        %v763 = vpop.f32.mrb[0].mxu0
        %v764 = vadd.f32 %v691, %v763
        %v765 = vpop.f32.mrb[0].mxu0
        %766 = vdwg.mxu0
        %v767 = vld [vmem:[%s3] sm:$0x1]
        %v769 = vlaneseq
        %v770 = vshrl.u32 %v769, 7
        %v771 = vsub.s32 0, %v770
        %v772 = vrot.slane %v767, %v771
        %v774 = vmax.f32 %v764, %v772
        %v775 = vld [vmem:[%s4] sm:$0x1]
        %v777 = vlaneseq
        %v778 = vshrl.u32 %v777, 7
        %v779 = vsub.s32 0, %v778
        %v780 = vrot.slane %v775, %v779
        %v782 = vmin.f32 %v774, %v780
        %783 = vst [vmem:[%s290] sm:$0xff] %v782
        %s784 = sand.u32 %s167, 1
        %s785 = scalar_lea.sflag [#allocation4], %s784
        %s786 = sand.u32 %s167, 1
        %s787 = smul.addr %s786, 8
        %s788 = scalar_lea.vmem [#allocation7], %s787
        // Predicated region
        $region49: #{tpu_custom_call.1} parent=39 // pred_check
          %p789 = pneg %p177
        $region50: #{tpu_custom_call.1} parent=39 // pred_check_branch
          %791 = sbr.rel (%p789) target = $region52
        $region51: #{tpu_custom_call.1} parent=39 // pred_region
          %s793 = ssub.s32 128, 128
          %794 = vsyncadd %s785, %s793
          %s795 = sadd.s32 %s28, %s27
          %s796 = smul.addr %s795, 128
          %s797 = scalar_lea.hbm %s5, %s796
          %s799 = sshll.u32 %s788, 4
          %s800 = int_to_ptr.vmem [resolvable:$true] %s799
          %802 = dma.vmem_to_hbm [thread:$0]  %s800, 128, %s797, %s785
        $region52: #{tpu_custom_call.1} parent=39 // pred_fallthru
          _
      $region40: #{tpu_custom_call.1} parent=5 // pred_fallthru
        _
      %p803 = scmp.le.s32.totalorder 2, %s18
      // Predicated region
      $region53: #{tpu_custom_call.1} parent=5 // pred_check
        %p804 = pneg %p803
      $region54: #{tpu_custom_call.1} parent=5 // pred_check_branch
        %806 = sbr.rel (%p804) target = $region56
      $region55: #{tpu_custom_call.1} parent=5 // pred_region
        %s807 = ssub.s32 %s18, 2
        // Predicated region
        $region57: #{tpu_custom_call.1} parent=55 // pred_check
          %p808 = pneg %p183
        $region58: #{tpu_custom_call.1} parent=55 // pred_check_branch
          %810 = sbr.rel (%p808) target = $region60
        $region59: #{tpu_custom_call.1} parent=55 // pred_region
          %s811 = sand.u32 %s168, 1
          %s812 = scalar_lea.sflag [#allocation4], %s811
          %s813 = sand.u32 %s168, 1
          %s814 = smul.addr %s813, 8
          %s815 = scalar_lea.vmem [#allocation7], %s814
          %816 = dma.done %s812, 128
        $region60: #{tpu_custom_call.1} parent=55 // pred_fallthru
          _
      $region56: #{tpu_custom_call.1} parent=5 // pred_fallthru
        _
    $region6: #{tpu_custom_call.1} parent=1 // loop_footer
      %s22 = sadd.s32 1, %s18
    $region7: #{tpu_custom_call.1} parent=1 // loop_footer_branch
      %17 = sbr.rel target = $region3
    $region8: #{tpu_custom_call.1} parent=1 // loop_exit
      _
    %817 = vsyncpa [#allocation3], 1
    %s818 = scalar_lea.sflag [#allocation3], 1
    %819 = vsyncpa %s818, 1
    %820 = vsyncpa [#allocation6], 1
    %821 = vsyncpa [#allocation4], 1
    %s822 = scalar_lea.sflag [#allocation4], 1
    %823 = vsyncpa %s822, 1

</llo_original>
